<compile_context>
chip_gen: v6e
topology: v6e:2x2x1
jax: 0.10.0
libtpu: 0.0.40
codegen_flags: <defaults>
</compile_context>

<pallas_src>
import functools

import jax
import jax.numpy as jnp
from jax.experimental import pallas as pl
from jax.experimental.pallas import tpu as pltpu


def _round_up(x, m):
    return (x + m - 1) // m * m


def _cdiv(a, b):
    return (a + b - 1) // b


def _sublane_align(dtype):
    # Packing tile is (8,128) for 32-bit, (16,128) for bf16/f16, (32,128) for int8/fp8.
    itemsize = jnp.dtype(dtype).itemsize
    return max(8, 32 // max(itemsize, 1))


def _balanced_tile(dim, pref, align):
    """Largest tile <= pref splitting `dim` into balanced, `align`-multiple blocks.

    If dim <= pref the block covers the whole axis (always a legal block dim).
    Otherwise the wasted work is bounded by one alignment unit, not ~2x.
    """
    if dim <= pref:
        return dim
    nblk = _cdiv(dim, pref)
    return min(_round_up(_cdiv(dim, nblk), align), _round_up(pref, align))


def _vmem_capacity_bytes():
    try:
        cap = getattr(pltpu.get_tpu_info(), "vmem_capacity_bytes", None)
        if cap:
            return int(cap)
    except Exception:
        pass
    return 64 * 1024 * 1024  # conservative fallback: v7x per-TensorCore VMEM


def _matmul_kernel_f32out(a_ref, b_ref, o_ref, *, precision):
    # f32 output: accumulate directly into the VMEM-resident output block (the output
    # BlockSpec returns the same (i, j) block for every k).  Init folded into k == 0.
    prod = jnp.dot(a_ref[...], b_ref[...],
                   preferred_element_type=jnp.float32, precision=precision)
    first = pl.program_id(2) == 0

    @pl.when(first)
    def _():
        o_ref[...] = prod

    @pl.when(jnp.logical_not(first))
    def _():
        o_ref[...] += prod


def _matmul_kernel_acc(a_ref, b_ref, o_ref, acc_ref, *, precision):
    # Narrow output dtypes: accumulate in an f32 scratch, cast once on the last k step.
    prod = jnp.dot(a_ref[...], b_ref[...],
                   preferred_element_type=jnp.float32, precision=precision)
    first = pl.program_id(2) == 0

    @pl.when(first)
    def _():
        acc_ref[...] = prod

    @pl.when(jnp.logical_not(first))
    def _():
        acc_ref[...] += prod

    @pl.when(pl.program_id(2) == pl.num_programs(2) - 1)
    def _():
        o_ref[...] = acc_ref[...].astype(o_ref.dtype)


def matmul(a, b, *, tm=1024, tn=1024, tk=512, precision=None):
    """2-D matmul with the semantics of torch `a @ b` for 2-D operands.

    `precision` is forwarded to jnp.dot: None/DEFAULT is the fast single-bf16-pass
    regime; jax.lax.Precision.HIGHEST gives torch-f32-parity numerics at 3-6x MXU cost.
    """
    assert a.ndim == 2 and b.ndim == 2, "this kernel handles 2-D operands"
    M, K = a.shape
    K2, N = b.shape
    assert K == K2, "inner dims must match"

    out_dtype = jnp.result_type(a.dtype, b.dtype)
    if a.dtype != out_dtype:
        a = a.astype(out_dtype)
    if b.dtype != out_dtype:
        b = b.astype(out_dtype)
    # TODO(synk): optional bf16-input fast path (halves HBM bytes / doubles AI) when
    # strict f32 input parity is not required.

    in_isz = jnp.dtype(a.dtype).itemsize
    out_isz = jnp.dtype(out_dtype).itemsize
    accumulate_in_out = out_dtype == jnp.float32
    m_align = _sublane_align(out_dtype)

    # --- Tile selection -------------------------------------------------------------
    tm = _balanced_tile(M, tm, m_align)
    tn = _balanced_tile(N, tn, 128)
    tk = _balanced_tile(K, tk, 128)

    budget = int(_vmem_capacity_bytes() * 0.7)  # ~90 MiB on v5e/v6e, ~45 MiB on v7x

    def footprint(tm_, tn_, tk_):
        return (2 * (tm_ * tk_ + tk_ * tn_) * in_isz      # double-buffered A, B tiles
                + 2 * tm_ * tn_ * out_isz                  # double-buffered output tile
                + (0 if accumulate_in_out else tm_ * tn_ * 4))

    while footprint(tm, tn, tk) > budget:
        if tn >= 256:
            tn = _round_up(tn // 2, 128)
        elif tm >= 2 * m_align and tm > 128:
            tm = _round_up(tm // 2, m_align)
        elif tk >= 256:
            tk = _round_up(tk // 2, 128)
        else:
            break

    # v7x has 2 TensorCores: make sure the parallel (i, j) grid has >= 2 blocks when the
    # problem is big enough to be worth splitting (otherwise one core sits idle).
    if M * N >= 512 * 512:
        while _cdiv(M, tm) * _cdiv(N, tn) < 2:
            if tn >= 256 and tn >= tm:
                tn = _round_up(tn // 2, 128)
            elif tm >= 2 * m_align:
                tm = _round_up(_cdiv(tm, 2), m_align)
            else:
                break

    # --- K padding only -------------------------------------------------------------
    # Ragged M/N are handled by partial blocks (writes masked, garbage rows/cols only
    # influence masked-out outputs).  Along K, out-of-bounds garbage would corrupt kept
    # outputs, so zero-pad K to a tile multiple (exact for matmul).
    Kp = _round_up(K, tk)
    if Kp != K:
        a = jnp.pad(a, ((0, 0), (0, Kp - K)))
        b = jnp.pad(b, ((0, Kp - K), (0, 0)))

    grid = (_cdiv(M, tm), _cdiv(N, tn), Kp // tk)
    gi, gj, _ = grid

    if accumulate_in_out:
        kernel = functools.partial(_matmul_kernel_f32out, precision=precision)
        scratch = []
    else:
        kernel = functools.partial(_matmul_kernel_acc, precision=precision)
        scratch = [pltpu.VMEM((tm, tn), jnp.float32)]

    vmem_limit = int(max(budget, 16 * 1024 * 1024))

    cost = pl.CostEstimate(
        flops=2 * M * N * K,
        bytes_accessed=(gj * M * Kp + gi * Kp * N) * in_isz + M * N * out_isz,
        transcendentals=0,
    )

    return pl.pallas_call(
        kernel,
        out_shape=jax.ShapeDtypeStruct((M, N), out_dtype),
        grid_spec=pltpu.PrefetchScalarGridSpec(
            num_scalar_prefetch=0,
            grid=grid,
            in_specs=[
                pl.BlockSpec((tm, tk), lambda i, j, k: (i, k)),
                pl.BlockSpec((tk, tn), lambda i, j, k: (k, j)),
            ],
            out_specs=pl.BlockSpec((tm, tn), lambda i, j, k: (i, j)),
            scratch_shapes=scratch,
        ),
        compiler_params=pltpu.CompilerParams(
            dimension_semantics=("parallel", "parallel", "arbitrary"),
            vmem_limit_bytes=vmem_limit,
        ),
        cost_estimate=cost,
    )(a, b)


if __name__ == "__main__":
    key = jax.random.PRNGKey(0)
    ka, kb, kc, kd = jax.random.split(key, 4)

    def check(a, b):
        out = jax.block_until_ready(matmul(a, b))
        ref = jnp.dot(a, b, precision=jax.lax.Precision.HIGHEST)
        assert out.shape == ref.shape and out.dtype == ref.dtype
        scale = jnp.maximum(jnp.max(jnp.abs(ref)), 1.0)
        err = float(jnp.max(jnp.abs(out - ref)) / scale)
        # Tolerance covers both exact-f32 and default (single-bf16-pass) matmul regimes.
        assert err < 2e-2, f"max scaled error {err}"

    # Small, ragged shapes: partial M/N output blocks, K padded inside the wrapper.
    a = jax.random.normal(ka, (72, 200), dtype=jnp.float32)
    b = jax.random.normal(kb, (200, 56), dtype=jnp.float32)
    check(a, b)

    # Small, MXU-aligned shapes: single K step, no padding anywhere.
    a2 = jax.random.normal(kc, (128, 256), dtype=jnp.float32)
    b2 = jax.random.normal(kd, (256, 128), dtype=jnp.float32)
    check(a2, b2)

    print("KERNEL_OK")
</pallas_src>

<mosaic_0001>
module attributes {stable_mosaic.version = 11 : i64} {
  func.func @_matmul_kernel_f32out(%arg0: i32, %arg1: i32, %arg2: i32, %arg3: memref<72x200xf32, #tpu.memory_space<vmem>>, %arg4: memref<200x56xf32, #tpu.memory_space<vmem>>, %arg5: memref<72x56xf32, #tpu.memory_space<vmem>>) attributes {dimension_semantics = [#tpu.dimension_semantics<parallel>, #tpu.dimension_semantics<parallel>, #tpu.dimension_semantics<arbitrary>], iteration_bounds = array<i64: 1, 1, 1>, scalar_prefetch = 0 : i64, scratch_operands = 0 : i64, tpu.core_type = #tpu.core_type<tc>, window_params = [{transform_indices = @transform_0, window_bounds = array<i64: 72, 200>}, {transform_indices = @transform_1, window_bounds = array<i64: 200, 56>}, {transform_indices = @transform_2, window_bounds = array<i64: 72, 56>}]} {
    %c0 = arith.constant 0 : index
    %c0_0 = arith.constant 0 : index
    %0 = vector.load %arg3[%c0, %c0_0] : memref<72x200xf32, #tpu.memory_space<vmem>>, vector<72x200xf32>
    %c0_1 = arith.constant 0 : index
    %c0_2 = arith.constant 0 : index
    %1 = vector.load %arg4[%c0_1, %c0_2] : memref<200x56xf32, #tpu.memory_space<vmem>>, vector<200x56xf32>
    %cst = arith.constant dense<0.000000e+00> : vector<72x56xf32>
    %2 = tpu.matmul %0, %1, %cst {dimension_numbers = #tpu.dot_dimension_numbers<[1], [0], [0], [1], [0, 0, 1, 1], [], []>} : vector<72x200xf32>, vector<200x56xf32>, vector<72x56xf32> -> vector<72x56xf32>
    %c0_i32 = arith.constant 0 : i32
    %3 = arith.cmpi eq, %arg2, %c0_i32 : i32
    %4 = arith.extui %3 : i1 to i32
    %c0_i32_3 = arith.constant 0 : i32
    %5 = arith.cmpi ne, %4, %c0_i32_3 : i32
    scf.if %5 {
      %c0_5 = arith.constant 0 : index
      %c0_6 = arith.constant 0 : index
      %9 = vector.load %arg5[%c0_5, %c0_6] : memref<72x56xf32, #tpu.memory_space<vmem>>, vector<72x56xf32>
      tpu.vector_store %arg5[%c0_5, %c0_6], %2 {strides = array<i32>} : memref<72x56xf32, #tpu.memory_space<vmem>>, vector<72x56xf32>,
    } else {
    }
    %true = arith.constant true
    %6 = arith.xori %3, %true : i1
    %7 = arith.extui %6 : i1 to i32
    %c0_i32_4 = arith.constant 0 : i32
    %8 = arith.cmpi ne, %7, %c0_i32_4 : i32
    scf.if %8 {
      %c0_5 = arith.constant 0 : index
      %c0_6 = arith.constant 0 : index
      %9 = vector.load %arg5[%c0_5, %c0_6] : memref<72x56xf32, #tpu.memory_space<vmem>>, vector<72x56xf32>
      %10 = arith.addf %9, %2 : vector<72x56xf32>
      %c0_7 = arith.constant 0 : index
      %c0_8 = arith.constant 0 : index
      %11 = vector.load %arg5[%c0_7, %c0_8] : memref<72x56xf32, #tpu.memory_space<vmem>>, vector<72x56xf32>
      tpu.vector_store %arg5[%c0_7, %c0_8], %10 {strides = array<i32>} : memref<72x56xf32, #tpu.memory_space<vmem>>, vector<72x56xf32>,
    } else {
    }
    return
  }
  func.func @transform_0(%arg0: i32, %arg1: i32, %arg2: i32) -> (i32, i32) {
    %c0_i32 = arith.constant 0 : i32
    return %arg0, %arg2 : i32, i32
  }
  func.func @transform_1(%arg0: i32, %arg1: i32, %arg2: i32) -> (i32, i32) {
    %c0_i32 = arith.constant 0 : i32
    return %arg2, %arg1 : i32, i32
  }
  func.func @transform_2(%arg0: i32, %arg1: i32, %arg2: i32) -> (i32, i32) {
    %c0_i32 = arith.constant 0 : i32
    return %arg0, %arg1 : i32, i32
  }
}

</mosaic_0001>

<llo_original>
// kernel: tpu_custom_call.1
$region0: #{tpu_custom_call.1}
  #allocation0 [shape = 'u32[]', space=smem, size = 0x4, offset = 0x4, fixed_abs, tag = 'smem constant byte address 0x4 - core index']
  #allocation1 [shape = 'u32[144,128]{1,0:T(1,128)}', space=vmem, size = 0x12000, scoped, tag = 'internal scratch']
  %s0 = inlined_call_operand.vmem [shape: f32[72,200], index: 0, kind: input, shape index: {}]
  %s1 = inlined_call_operand.vmem [shape: f32[200,56], index: 1, kind: input, shape index: {}]
  %s2 = inlined_call_operand.vmem [shape: f32[72,56], index: 2, kind: output, shape index: {}]
  %s3 = sld [smem:[#allocation0]]
  $region26: #{tpu_custom_call.1} parent=0
    _
  %s5 = ssub.s32 1, %s3
  %s6 = scalar_select 0, %s5, %s3
  // Predicated region
  $region2: #{tpu_custom_call.1} parent=0 // pred_check
    _
  $region3: #{tpu_custom_call.1} parent=0 // pred_check_branch
    %8 = sbr.rel (0) target = $region5
  $region4: #{tpu_custom_call.1} parent=0 // pred_region
    _
  $region5: #{tpu_custom_call.1} parent=0 // pred_fallthru
    _
  // Predicated region
  $region6: #{tpu_custom_call.1} parent=0 // pred_check
    _
  $region7: #{tpu_custom_call.1} parent=0 // pred_check_branch
    %10 = sbr.rel (0) target = $region9
  $region8: #{tpu_custom_call.1} parent=0 // pred_region
    _
  $region9: #{tpu_custom_call.1} parent=0 // pred_fallthru
    _
  %v11 = vld [vmem:[%s0] sm:$0xff]
  %v12 = vld [vmem:[%s0 + $0x8] sm:$0xff]
  %v13 = vld [vmem:[%s0 + $0x10] sm:$0xff]
  %v14 = vld [vmem:[%s0 + $0x18] sm:$0xff]
  %v15 = vld [vmem:[%s0 + $0x20] sm:$0xff]
  %v16 = vld [vmem:[%s0 + $0x28] sm:$0xff]
  %v17 = vld [vmem:[%s0 + $0x30] sm:$0xff]
  %v18 = vld [vmem:[%s0 + $0x38] sm:$0xff]
  %v19 = vld [vmem:[%s0 + $0x40] sm:$0xff]
  %v20 = vld [vmem:[%s0 + $0x48] sm:$0xff]
  %v21 = vld [vmem:[%s0 + $0x50] sm:$0xff]
  %v22 = vld [vmem:[%s0 + $0x58] sm:$0xff]
  %v23 = vld [vmem:[%s0 + $0x60] sm:$0xff]
  %v24 = vld [vmem:[%s0 + $0x68] sm:$0xff]
  %v25 = vld [vmem:[%s0 + $0x70] sm:$0xff]
  %v26 = vld [vmem:[%s0 + $0x78] sm:$0xff]
  %v27 = vld [vmem:[%s0 + $0x80] sm:$0xff]
  %v28 = vld [vmem:[%s0 + $0x88] sm:$0xff]
  %v29 = vld [vmem:[%s1] sm:$0xff]
  %v30 = vld [vmem:[%s1 + $0x8] sm:$0xff]
  %v31 = vld [vmem:[%s1 + $0x10] sm:$0xff]
  %v32 = vld [vmem:[%s1 + $0x18] sm:$0xff]
  %v33 = vld [vmem:[%s1 + $0x20] sm:$0xff]
  %v34 = vld [vmem:[%s1 + $0x28] sm:$0xff]
  %v35 = vld [vmem:[%s1 + $0x30] sm:$0xff]
  %v36 = vld [vmem:[%s1 + $0x38] sm:$0xff]
  %v37 = vld [vmem:[%s1 + $0x40] sm:$0xff]
  %v38 = vld [vmem:[%s1 + $0x48] sm:$0xff]
  %v39 = vld [vmem:[%s1 + $0x50] sm:$0xff]
  %v40 = vld [vmem:[%s1 + $0x58] sm:$0xff]
  %v41 = vld [vmem:[%s1 + $0x60] sm:$0xff]
  %v42 = vld [vmem:[%s1 + $0x68] sm:$0xff]
  %v43 = vld [vmem:[%s1 + $0x70] sm:$0xff]
  %v44 = vld [vmem:[%s1 + $0x78] sm:$0xff]
  %v45 = vld [vmem:[%s1 + $0x80] sm:$0xff]
  %v46 = vld [vmem:[%s1 + $0x88] sm:$0xff]
  %v47 = vld [vmem:[%s1 + $0x90] sm:$0xff]
  %v48 = vld [vmem:[%s1 + $0x98] sm:$0xff]
  %v49 = vld [vmem:[%s1 + $0xa0] sm:$0xff]
  %v50 = vld [vmem:[%s1 + $0xa8] sm:$0xff]
  %v51 = vld [vmem:[%s1 + $0xb0] sm:$0xff]
  %v52 = vld [vmem:[%s1 + $0xb8] sm:$0xff]
  %v53 = vld [vmem:[%s1 + $0xc0] sm:$0xff]
  %vm54 = vcmask 588800
  %v56 = vsel %vm54, %v12, 0
  %v59 = vsel %vm54, %v14, 0
  %v62 = vsel %vm54, %v16, 0
  %v65 = vsel %vm54, %v18, 0
  %v68 = vsel %vm54, %v20, 0
  %v71 = vsel %vm54, %v22, 0
  %v74 = vsel %vm54, %v24, 0
  %v77 = vsel %vm54, %v26, 0
  %v80 = vsel %vm54, %v28, 0
  %82 = vmatprep.subr.mxu0 0.0
  %83 = vmatpush1.msra.mxu0 %v44
  %84 = vmatprep.subr.mxu0 0.0
  %85 = vmatpush1.msra.mxu0 %v43
  %86 = vmatprep.subr.mxu0 0.0
  %87 = vmatpush1.msra.mxu0 %v42
  %88 = vmatprep.subr.mxu0 0.0
  %89 = vmatpush1.msra.mxu0 %v41
  %90 = vmatprep.subr.mxu0 0.0
  %91 = vmatpush1.msra.mxu0 %v40
  %92 = vmatprep.subr.mxu0 0.0
  %93 = vmatpush1.msra.mxu0 %v39
  %94 = vmatprep.subr.mxu0 0.0
  %95 = vmatpush1.msra.mxu0 %v38
  %96 = vmatprep.subr.mxu0 0.0
  %97 = vmatpush1.msra.mxu0 %v37
  %98 = vmatprep.subr.mxu0 0.0
  %99 = vmatpush1.msra.mxu0 %v36
  %100 = vmatprep.subr.mxu0 0.0
  %101 = vmatpush1.msra.mxu0 %v35
  %102 = vmatprep.subr.mxu0 0.0
  %103 = vmatpush1.msra.mxu0 %v34
  %104 = vmatprep.subr.mxu0 0.0
  %105 = vmatpush1.msra.mxu0 %v33
  %106 = vmatprep.subr.mxu0 0.0
  %107 = vmatpush1.msra.mxu0 %v32
  %108 = vmatprep.subr.mxu0 0.0
  %109 = vmatpush1.msra.mxu0 %v31
  %110 = vmatprep.subr.mxu0 0.0
  %111 = vmatpush1.msra.mxu0 %v30
  %112 = vmatprep.subr.mxu0 0.0
  %113 = vmatpush1.msra.mxu0 %v29
  %114 = vmatprep.subr.mxu0 0.0
  %115 = vmatpush2.msra.mxu0 0.0
  %116 = vmatprep.subr.mxu0 0.0
  %117 = vmatpush2.msra.mxu0 0.0
  %118 = vmatprep.subr.mxu0 0.0
  %119 = vmatpush2.msra.mxu0 0.0
  %120 = vmatprep.subr.mxu0 0.0
  %121 = vmatpush2.msra.mxu0 0.0
  %122 = vmatprep.subr.mxu0 0.0
  %123 = vmatpush2.msra.mxu0 0.0
  %124 = vmatprep.subr.mxu0 0.0
  %125 = vmatpush2.msra.mxu0 0.0
  %126 = vmatprep.subr.mxu0 0.0
  %127 = vmatpush2.msra.mxu0 0.0
  %128 = vmatprep.subr.mxu0 0.0
  %129 = vmatpush2.msra.mxu0 %v53
  %130 = vmatprep.subr.mxu0 0.0
  %131 = vmatpush2.msra.mxu0 %v52
  %132 = vmatprep.subr.mxu0 0.0
  %133 = vmatpush2.msra.mxu0 %v51
  %134 = vmatprep.subr.mxu0 0.0
  %135 = vmatpush2.msra.mxu0 %v50
  %136 = vmatprep.subr.mxu0 0.0
  %137 = vmatpush2.msra.mxu0 %v49
  %138 = vmatprep.subr.mxu0 0.0
  %139 = vmatpush2.msra.mxu0 %v48
  %140 = vmatprep.subr.mxu0 0.0
  %141 = vmatpush2.msra.mxu0 %v47
  %142 = vmatprep.subr.mxu0 0.0
  %143 = vmatpush2.msra.mxu0 %v46
  %144 = vmatprep.subr.mxu0 0.0
  %145 = vmatpush2.msra.mxu0 %v45
  %146 = vmatprep.mubr.f32.mxu0 %v56
  %147 = vmatmul.mubr.f32.gmra.mxu0 %v11
  %v148 = vpop.f32.mrf.mxu0
  %v149 = vadd.f32 0.0, %v148
  %v150 = vpop.f32.mrf.mxu0
  %151 = vmatprep.mubr.f32.mxu0 %v59
  %152 = vmatmul.mubr.f32.gmra.mxu0 %v13
  %v153 = vpop.f32.mrf.mxu0
  %v154 = vadd.f32 0.0, %v153
  %v155 = vpop.f32.mrf.mxu0
  %156 = vmatprep.mubr.f32.mxu0 %v62
  %157 = vmatmul.mubr.f32.gmra.mxu0 %v15
  %v158 = vpop.f32.mrf.mxu0
  %v159 = vadd.f32 0.0, %v158
  %v160 = vpop.f32.mrf.mxu0
  %161 = vmatprep.mubr.f32.mxu0 %v65
  %162 = vmatmul.mubr.f32.gmra.mxu0 %v17
  %v163 = vpop.f32.mrf.mxu0
  %v164 = vadd.f32 0.0, %v163
  %v165 = vpop.f32.mrf.mxu0
  %166 = vmatprep.mubr.f32.mxu0 %v68
  %167 = vmatmul.mubr.f32.gmra.mxu0 %v19
  %v168 = vpop.f32.mrf.mxu0
  %v169 = vadd.f32 0.0, %v168
  %v170 = vpop.f32.mrf.mxu0
  %171 = vmatprep.mubr.f32.mxu0 %v71
  %172 = vmatmul.mubr.f32.gmra.mxu0 %v21
  %v173 = vpop.f32.mrf.mxu0
  %v174 = vadd.f32 0.0, %v173
  %v175 = vpop.f32.mrf.mxu0
  %176 = vmatprep.mubr.f32.mxu0 %v74
  %177 = vmatmul.mubr.f32.gmra.mxu0 %v23
  %v178 = vpop.f32.mrf.mxu0
  %v179 = vadd.f32 0.0, %v178
  %v180 = vpop.f32.mrf.mxu0
  %181 = vmatprep.mubr.f32.mxu0 %v77
  %182 = vmatmul.mubr.f32.gmra.mxu0 %v25
  %v183 = vpop.f32.mrf.mxu0
  %v184 = vadd.f32 0.0, %v183
  %v185 = vpop.f32.mrf.mxu0
  %186 = vmatprep.mubr.f32.mxu0 %v80
  %187 = vmatmul.mubr.f32.gmra.mxu0 %v27
  %v188 = vpop.f32.mrf.mxu0
  %v189 = vadd.f32 0.0, %v188
  %v190 = vpop.f32.mrf.mxu0
  %191 = vdwg.mxu0
  %p192 = scmp.eq.s32.totalorder 0, 0
  // Predicated region
  $region10: #{tpu_custom_call.1} parent=0 // pred_check
    %p193 = pneg %p192
  $region11: #{tpu_custom_call.1} parent=0 // pred_check_branch
    %195 = sbr.rel (%p193) target = $region13
  $region12: #{tpu_custom_call.1} parent=0 // pred_region
    %vm196 = vcmask 457728
    %197 = vst.msk [vmem:[%s2] sm:$0xff] %vm196, %v149
    %198 = vst.msk [vmem:[%s2 + $0x8] sm:$0xff] %vm196, %v154
    %199 = vst.msk [vmem:[%s2 + $0x10] sm:$0xff] %vm196, %v159
    %200 = vst.msk [vmem:[%s2 + $0x18] sm:$0xff] %vm196, %v164
    %201 = vst.msk [vmem:[%s2 + $0x20] sm:$0xff] %vm196, %v169
    %202 = vst.msk [vmem:[%s2 + $0x28] sm:$0xff] %vm196, %v174
    %203 = vst.msk [vmem:[%s2 + $0x30] sm:$0xff] %vm196, %v179
    %204 = vst.msk [vmem:[%s2 + $0x38] sm:$0xff] %vm196, %v184
    %205 = vst.msk [vmem:[%s2 + $0x40] sm:$0xff] %vm196, %v189
  $region13: #{tpu_custom_call.1} parent=0 // pred_fallthru
    _
  %p206 = scmp.ne.s32.totalorder 0, 0
  // Predicated region
  $region14: #{tpu_custom_call.1} parent=0 // pred_check
    %p207 = pneg %p206
  $region15: #{tpu_custom_call.1} parent=0 // pred_check_branch
    %209 = sbr.rel (%p207) target = $region17
  $region16: #{tpu_custom_call.1} parent=0 // pred_region
    %v210 = vld [vmem:[%s2] sm:$0xff]
    %v211 = vld [vmem:[%s2 + $0x8] sm:$0xff]
    %v212 = vld [vmem:[%s2 + $0x10] sm:$0xff]
    %v213 = vld [vmem:[%s2 + $0x18] sm:$0xff]
    %v214 = vld [vmem:[%s2 + $0x20] sm:$0xff]
    %v215 = vld [vmem:[%s2 + $0x28] sm:$0xff]
    %v216 = vld [vmem:[%s2 + $0x30] sm:$0xff]
    %v217 = vld [vmem:[%s2 + $0x38] sm:$0xff]
    %v218 = vld [vmem:[%s2 + $0x40] sm:$0xff]
    %v219 = vadd.f32 %v210, %v149
    %v220 = vadd.f32 %v211, %v154
    %v221 = vadd.f32 %v212, %v159
    %v222 = vadd.f32 %v213, %v164
    %v223 = vadd.f32 %v214, %v169
    %v224 = vadd.f32 %v215, %v174
    %v225 = vadd.f32 %v216, %v179
    %v226 = vadd.f32 %v217, %v184
    %v227 = vadd.f32 %v218, %v189
    %vm228 = vcmask 457728
    %229 = vst.msk [vmem:[%s2] sm:$0xff] %vm228, %v219
    %230 = vst.msk [vmem:[%s2 + $0x8] sm:$0xff] %vm228, %v220
    %231 = vst.msk [vmem:[%s2 + $0x10] sm:$0xff] %vm228, %v221
    %232 = vst.msk [vmem:[%s2 + $0x18] sm:$0xff] %vm228, %v222
    %233 = vst.msk [vmem:[%s2 + $0x20] sm:$0xff] %vm228, %v223
    %234 = vst.msk [vmem:[%s2 + $0x28] sm:$0xff] %vm228, %v224
    %235 = vst.msk [vmem:[%s2 + $0x30] sm:$0xff] %vm228, %v225
    %236 = vst.msk [vmem:[%s2 + $0x38] sm:$0xff] %vm228, %v226
    %237 = vst.msk [vmem:[%s2 + $0x40] sm:$0xff] %vm228, %v227
  $region17: #{tpu_custom_call.1} parent=0 // pred_fallthru
    _
  // Predicated region
  $region18: #{tpu_custom_call.1} parent=0 // pred_check
    _
  $region19: #{tpu_custom_call.1} parent=0 // pred_check_branch
    %239 = sbr.rel (0) target = $region21
  $region20: #{tpu_custom_call.1} parent=0 // pred_region
    _
  $region21: #{tpu_custom_call.1} parent=0 // pred_fallthru
    _
  // Predicated region
  $region22: #{tpu_custom_call.1} parent=0 // pred_check
    _
  $region23: #{tpu_custom_call.1} parent=0 // pred_check_branch
    %241 = sbr.rel (0) target = $region25
  $region24: #{tpu_custom_call.1} parent=0 // pred_region
    _
  $region25: #{tpu_custom_call.1} parent=0 // pred_fallthru
    _

</llo_original>
